<compile_context>
chip_gen: v7x
topology: tpu7x:2x2x1
jax: 0.10.0
libtpu: 0.0.40
codegen_flags: <defaults>
</compile_context>

<pallas_src>
import functools

import jax
import jax.numpy as jnp
from jax import lax
from jax.experimental import pallas as pl
from jax.experimental.pallas import tpu as pltpu

_LANES = 128  # TPU lane width


def _round_up(x, m):
    return ((x + m - 1) // m) * m


# ----------------------------- Pallas kernel --------------------------------

def _mlp_kernel(x_ref, w_ref, b_ref, out_ref, *,
                state_dim: int, action_dim: int, discrete: bool):
    """4-layer tanh MLP on one (tile_b, state_dim) batch tile.

    w_ref  : (4, 128, 128) weight slab; layer L zero-padded to 128x128 so every
             hidden matmul is a native (tb,128)@(128,128) MXU op. Zero weight
             columns + zero bias lanes propagate exactly 0 through tanh.
    b_ref  : (8, 128) bias slab; row L = bias of layer L+1 (zero padded).
    out_ref: (tile_b, action_dim) — written directly (no lane padding).
    """
    x = x_ref[...]                                              # (tb, state_dim)

    h = jnp.tanh(jnp.dot(x, w_ref[0, :state_dim, :],
                         preferred_element_type=jnp.float32) + b_ref[0:1, :])
    h = jnp.tanh(jnp.dot(h, w_ref[1],
                         preferred_element_type=jnp.float32) + b_ref[1:2, :])
    h = jnp.tanh(jnp.dot(h, w_ref[2],
                         preferred_element_type=jnp.float32) + b_ref[2:3, :])
    logits = (jnp.dot(h, w_ref[3],
                      preferred_element_type=jnp.float32)
              + b_ref[3:4, :])[:, :action_dim]                  # (tb, action_dim)

    if discrete:
        m = jnp.max(logits, axis=-1, keepdims=True)
        e = jnp.exp(logits - m)
        out_ref[...] = (e / jnp.sum(e, axis=-1, keepdims=True)).astype(out_ref.dtype)
    else:
        out_ref[...] = logits.astype(out_ref.dtype)


# ------------------------------- wrapper -------------------------------------

def _num_tensorcores():
    """Best-effort TensorCore count; conservative default is 1 (v5e/v6e)."""
    try:
        info = pltpu.get_tpu_info()
        for attr in ("num_cores", "num_tensorcores", "core_count",
                     "tensorcores_per_chip"):
            v = getattr(info, attr, None)
            if isinstance(v, int) and v > 0:
                return v
    except Exception:
        pass
    try:
        kind = jax.devices()[0].device_kind.lower()
        if any(t in kind for t in ("v4", "v5p", "v7", "7x")):
            return 2  # megacore / dual-TC chips
    except Exception:
        pass
    return 1


def _pack_params(params, state_dim, action_dim):
    """Pack w1..w4 / b1..b4 into tile-aligned resident slabs (done ONCE)."""
    dims = [(state_dim, 32), (32, 16), (16, 16), (16, action_dim)]
    w_slab = jnp.zeros((4, _LANES, _LANES), jnp.float32)
    b_slab = jnp.zeros((8, _LANES), jnp.float32)
    for layer, (fan_in, fan_out) in enumerate(dims):
        w = params[f"w{layer + 1}"]
        b = params[f"b{layer + 1}"].reshape(-1)
        w_slab = w_slab.at[layer, :fan_in, :fan_out].set(w)
        b_slab = b_slab.at[layer, :fan_out].set(b)
    return w_slab, b_slab


def _pick_tiling(B, max_tile, n_cores):
    """Pick a batch tile (rows) and number of grid steps."""
    # Single full-array block: legal for any B (block dims == array dims), and
    # cheapest when the batch fits one tile and there is only one TensorCore
    # (or too little work to be worth splitting).
    if B <= max_tile and (n_cores <= 1 or B < 16 * n_cores):
        return B, 1
    want_steps = max(n_cores, pl.cdiv(B, max_tile))
    tile = min(max_tile, _round_up(pl.cdiv(B, want_steps), 8))
    tile = max(tile, 8)
    if tile >= B:
        return B, 1
    return tile, pl.cdiv(B, tile)


def _run_mlp(states, w_slab, b_slab, *, state_dim, action_dim, discrete,
             n_cores, max_tile):
    """Run the MLP Pallas kernel. states: (B, state_dim) f32 -> (B, action_dim)."""
    B = states.shape[0]
    tile_b, grid_b = _pick_tiling(B, max_tile, n_cores)

    in_specs = [
        pl.BlockSpec((tile_b, state_dim), lambda i: (i, 0)),   # batch tile
        pl.BlockSpec(w_slab.shape, lambda i: (0, 0, 0)),       # resident weights
        pl.BlockSpec(b_slab.shape, lambda i: (0, 0)),          # resident biases
    ]
    out_specs = pl.BlockSpec((tile_b, action_dim), lambda i: (i, 0))  # narrow out

    # VMEM budget: double-buffered I/O tiles + resident slabs + intermediate
    # activations + headroom; capped at 48 MiB (leave Mosaic scratch headroom
    # under v7x's 64 MiB physical VMEM).
    slab_bytes = int(w_slab.size + b_slab.size) * 4
    io_bytes = tile_b * (state_dim + action_dim) * 4
    act_bytes = 6 * tile_b * _LANES * 4
    vmem_bytes = 2 * io_bytes + 2 * slab_bytes + act_bytes + (4 << 20)
    vmem_bytes = int(min(max(vmem_bytes, 16 << 20), 48 << 20))

    cost = pl.CostEstimate(
        flops=2 * B * (state_dim * 32 + 32 * 16 + 16 * 16 + 16 * action_dim),
        transcendentals=B * (32 + 16 + 16 + (action_dim if discrete else 0)),
        bytes_accessed=B * (state_dim + action_dim) * 4 + slab_bytes)

    return pl.pallas_call(
        functools.partial(_mlp_kernel, state_dim=state_dim,
                          action_dim=action_dim, discrete=discrete),
        out_shape=jax.ShapeDtypeStruct((B, action_dim), jnp.float32),
        grid_spec=pltpu.PrefetchScalarGridSpec(
            num_scalar_prefetch=0,
            grid=(grid_b,),
            in_specs=in_specs,
            out_specs=out_specs,
        ),
        compiler_params=pltpu.CompilerParams(
            dimension_semantics=("parallel",),
            vmem_limit_bytes=vmem_bytes),
        cost_estimate=cost,
    )(states, w_slab, b_slab)


# --------------------------- PolicyNetwork API --------------------------------

def init_policy_params(key, state_dim, action_dim, discrete):
    """Deterministic synthetic init (shapes match the PyTorch module)."""
    dims = [(state_dim, 32), (32, 16), (16, 16), (16, action_dim)]
    params = {}
    for idx, (fan_in, fan_out) in enumerate(dims, start=1):
        key, kw, kb = jax.random.split(key, 3)
        bound = 1.0 / jnp.sqrt(fan_in)
        params[f"w{idx}"] = jax.random.uniform(
            kw, (fan_in, fan_out), jnp.float32, -bound, bound)
        params[f"b{idx}"] = jax.random.uniform(
            kb, (1, fan_out), jnp.float32, -bound, bound)
    if not discrete:
        params["log_std"] = jnp.zeros((action_dim,), jnp.float32)
    return params


def make_policy_forward(params, state_dim, action_dim, discrete, max_tile=4096):
    """Build a jitted forward fn; weight slabs are packed ONCE here.

    discrete=True : forward(states) -> Categorical probs, shape (B, action_dim)
    discrete=False: forward(states) -> (mean (B, action_dim), cov (A, A))
    """
    # TODO(synk): torch.distributions objects (Categorical / MultivariateNormal)
    # have no Pallas equivalent; we return their parameters instead.
    w_slab, b_slab = _pack_params(params, state_dim, action_dim)
    log_std = params.get("log_std")
    n_cores = _num_tensorcores()

    @jax.jit
    def forward(states):
        out = _run_mlp(states, w_slab, b_slab, state_dim=state_dim,
                       action_dim=action_dim, discrete=discrete,
                       n_cores=n_cores, max_tile=max_tile)
        if discrete:
            return out
        std = jnp.exp(log_std)
        cov_mtx = jnp.eye(action_dim, dtype=jnp.float32) * std ** 2
        return out, cov_mtx

    return forward


# ----------------------------------- main ------------------------------------

if __name__ == "__main__":
    key = jax.random.PRNGKey(0)
    state_dim, action_dim, batch = 16, 4, 8

    k_in, k_par, k_big = jax.random.split(key, 3)
    states = jax.random.normal(k_in, (batch, state_dim), jnp.float32)

    def ref_mlp(x, p):
        dot = lambda a, b: jnp.dot(a, b, precision=lax.Precision.HIGHEST)
        h = jnp.tanh(dot(x, p["w1"]) + p["b1"])
        h = jnp.tanh(dot(h, p["w2"]) + p["b2"])
        h = jnp.tanh(dot(h, p["w3"]) + p["b3"])
        return dot(h, p["w4"]) + p["b4"]

    # discrete policy
    params_d = init_policy_params(k_par, state_dim, action_dim, discrete=True)
    fwd_d = make_policy_forward(params_d, state_dim, action_dim, discrete=True)
    probs = jax.block_until_ready(fwd_d(states))

    # continuous policy
    params_c = init_policy_params(k_par, state_dim, action_dim, discrete=False)
    fwd_c = make_policy_forward(params_c, state_dim, action_dim, discrete=False)
    mean, cov = fwd_c(states)
    mean = jax.block_until_ready(mean)
    cov = jax.block_until_ready(cov)

    # correctness vs pure-JAX reference (small batch)
    ref_probs = jax.nn.softmax(ref_mlp(states, params_d), axis=-1)
    assert probs.shape == (batch, action_dim)
    assert jnp.allclose(probs, ref_probs, atol=1e-4), "discrete mismatch"
    assert jnp.allclose(mean, ref_mlp(states, params_c), atol=1e-4), "mean mismatch"
    assert jnp.allclose(jnp.sum(probs, axis=-1), 1.0, atol=1e-4)
    assert cov.shape == (action_dim, action_dim)

    # larger, non-multiple-of-8 batch: exercises the multi-step / partial-block path
    big = jax.random.normal(k_big, (1000, state_dim), jnp.float32)
    big_probs = jax.block_until_ready(fwd_d(big))
    ref_big = jax.nn.softmax(ref_mlp(big, params_d), axis=-1)
    assert big_probs.shape == (1000, action_dim)
    assert jnp.allclose(big_probs, ref_big, atol=1e-4), "big-batch mismatch"

    print("KERNEL_OK")
</pallas_src>

<mosaic_0001>
module attributes {stable_mosaic.version = 11 : i64} {
  func.func @_mlp_kernel(%arg0: i32, %arg1: memref<8x16xf32, #tpu.memory_space<vmem>>, %arg2: memref<4x128x128xf32, #tpu.memory_space<vmem>>, %arg3: memref<8x128xf32, #tpu.memory_space<vmem>>, %arg4: memref<8x4xf32, #tpu.memory_space<vmem>>) attributes {dimension_semantics = [#tpu.dimension_semantics<parallel>], iteration_bounds = array<i64: 1>, scalar_prefetch = 0 : i64, scratch_operands = 0 : i64, tpu.core_type = #tpu.core_type<tc>, window_params = [{transform_indices = @transform_0, window_bounds = array<i64: 8, 16>}, {pipeline_mode = #tpu.pipeline_mode<synchronous>, transform_indices = @transform_1, window_bounds = array<i64: 4, 128, 128>}, {pipeline_mode = #tpu.pipeline_mode<synchronous>, transform_indices = @transform_2, window_bounds = array<i64: 8, 128>}, {transform_indices = @transform_3, window_bounds = array<i64: 8, 4>}]} {
    %c0 = arith.constant 0 : index
    %c0_0 = arith.constant 0 : index
    %0 = vector.load %arg1[%c0, %c0_0] : memref<8x16xf32, #tpu.memory_space<vmem>>, vector<8x16xf32>
    %c0_1 = arith.constant 0 : index
    %c0_2 = arith.constant 0 : index
    %c0_3 = arith.constant 0 : index
    %1 = vector.load %arg2[%c0_1, %c0_2, %c0_3] : memref<4x128x128xf32, #tpu.memory_space<vmem>>, vector<1x16x128xf32>
    %2 = vector.shape_cast %1 : vector<1x16x128xf32> to vector<16x128xf32>
    %cst = arith.constant dense<0.000000e+00> : vector<8x128xf32>
    %3 = tpu.matmul %0, %2, %cst {dimension_numbers = #tpu.dot_dimension_numbers<[1], [0], [0], [1], [0, 0, 1, 1], [], []>} : vector<8x16xf32>, vector<16x128xf32>, vector<8x128xf32> -> vector<8x128xf32>
    %c0_4 = arith.constant 0 : index
    %c0_5 = arith.constant 0 : index
    %4 = vector.load %arg3[%c0_4, %c0_5] : memref<8x128xf32, #tpu.memory_space<vmem>>, vector<1x128xf32>
    %5 = vector.broadcast %4 : vector<1x128xf32> to vector<8x128xf32>
    %6 = arith.addf %3, %5 : vector<8x128xf32>
    %7 = math.tanh %6 : vector<8x128xf32>
    %c1 = arith.constant 1 : index
    %c0_6 = arith.constant 0 : index
    %c0_7 = arith.constant 0 : index
    %8 = vector.load %arg2[%c1, %c0_6, %c0_7] : memref<4x128x128xf32, #tpu.memory_space<vmem>>, vector<1x128x128xf32>
    %9 = vector.shape_cast %8 : vector<1x128x128xf32> to vector<128x128xf32>
    %cst_8 = arith.constant dense<0.000000e+00> : vector<8x128xf32>
    %10 = tpu.matmul %7, %9, %cst_8 {dimension_numbers = #tpu.dot_dimension_numbers<[1], [0], [0], [1], [0, 0, 1, 1], [], []>} : vector<8x128xf32>, vector<128x128xf32>, vector<8x128xf32> -> vector<8x128xf32>
    %c1_9 = arith.constant 1 : index
    %c0_10 = arith.constant 0 : index
    %11 = vector.load %arg3[%c1_9, %c0_10] : memref<8x128xf32, #tpu.memory_space<vmem>>, vector<1x128xf32>
    %12 = vector.broadcast %11 : vector<1x128xf32> to vector<8x128xf32>
    %13 = arith.addf %10, %12 : vector<8x128xf32>
    %14 = math.tanh %13 : vector<8x128xf32>
    %c2 = arith.constant 2 : index
    %c0_11 = arith.constant 0 : index
    %c0_12 = arith.constant 0 : index
    %15 = vector.load %arg2[%c2, %c0_11, %c0_12] : memref<4x128x128xf32, #tpu.memory_space<vmem>>, vector<1x128x128xf32>
    %16 = vector.shape_cast %15 : vector<1x128x128xf32> to vector<128x128xf32>
    %cst_13 = arith.constant dense<0.000000e+00> : vector<8x128xf32>
    %17 = tpu.matmul %14, %16, %cst_13 {dimension_numbers = #tpu.dot_dimension_numbers<[1], [0], [0], [1], [0, 0, 1, 1], [], []>} : vector<8x128xf32>, vector<128x128xf32>, vector<8x128xf32> -> vector<8x128xf32>
    %c2_14 = arith.constant 2 : index
    %c0_15 = arith.constant 0 : index
    %18 = vector.load %arg3[%c2_14, %c0_15] : memref<8x128xf32, #tpu.memory_space<vmem>>, vector<1x128xf32>
    %19 = vector.broadcast %18 : vector<1x128xf32> to vector<8x128xf32>
    %20 = arith.addf %17, %19 : vector<8x128xf32>
    %21 = math.tanh %20 : vector<8x128xf32>
    %c3 = arith.constant 3 : index
    %c0_16 = arith.constant 0 : index
    %c0_17 = arith.constant 0 : index
    %22 = vector.load %arg2[%c3, %c0_16, %c0_17] : memref<4x128x128xf32, #tpu.memory_space<vmem>>, vector<1x128x128xf32>
    %23 = vector.shape_cast %22 : vector<1x128x128xf32> to vector<128x128xf32>
    %cst_18 = arith.constant dense<0.000000e+00> : vector<8x128xf32>
    %24 = tpu.matmul %21, %23, %cst_18 {dimension_numbers = #tpu.dot_dimension_numbers<[1], [0], [0], [1], [0, 0, 1, 1], [], []>} : vector<8x128xf32>, vector<128x128xf32>, vector<8x128xf32> -> vector<8x128xf32>
    %c3_19 = arith.constant 3 : index
    %c0_20 = arith.constant 0 : index
    %25 = vector.load %arg3[%c3_19, %c0_20] : memref<8x128xf32, #tpu.memory_space<vmem>>, vector<1x128xf32>
    %26 = vector.broadcast %25 : vector<1x128xf32> to vector<8x128xf32>
    %27 = arith.addf %24, %26 : vector<8x128xf32>
    %28 = vector.extract_strided_slice %27 {offsets = [0, 0], sizes = [8, 4], strides = [1, 1]} : vector<8x128xf32> to vector<8x4xf32>
    %cst_21 = arith.constant dense<0xFF800000> : vector<8xf32>
    %29 = vector.multi_reduction <maximumf>, %28, %cst_21 [1] : vector<8x4xf32> to vector<8xf32>
    %30 = vector.shape_cast %29 : vector<8xf32> to vector<8x1xf32>
    %31 = vector.broadcast %30 : vector<8x1xf32> to vector<8x4xf32>
    %32 = arith.subf %28, %31 : vector<8x4xf32>
    %33 = math.exp %32 : vector<8x4xf32>
    %cst_22 = arith.constant dense<0.000000e+00> : vector<8xf32>
    %34 = vector.multi_reduction <add>, %33, %cst_22 [1] : vector<8x4xf32> to vector<8xf32>
    %35 = vector.shape_cast %34 : vector<8xf32> to vector<8x1xf32>
    %36 = vector.broadcast %35 : vector<8x1xf32> to vector<8x4xf32>
    %37 = arith.divf %33, %36 : vector<8x4xf32>
    %c0_23 = arith.constant 0 : index
    %c0_24 = arith.constant 0 : index
    %38 = vector.load %arg4[%c0_23, %c0_24] : memref<8x4xf32, #tpu.memory_space<vmem>>, vector<8x4xf32>
    tpu.vector_store %arg4[%c0_23, %c0_24], %37 {strides = array<i32>} : memref<8x4xf32, #tpu.memory_space<vmem>>, vector<8x4xf32>,
    return
  }
  func.func @transform_0(%arg0: i32) -> (i32, i32) {
    %c0_i32 = arith.constant 0 : i32
    %c0_i32_0 = arith.constant 0 : i32
    return %arg0, %c0_i32 : i32, i32
  }
  func.func @transform_1(%arg0: i32) -> (i32, i32, i32) {
    %c0_i32 = arith.constant 0 : i32
    %c0_i32_0 = arith.constant 0 : i32
    %c0_i32_1 = arith.constant 0 : i32
    %c0_i32_2 = arith.constant 0 : i32
    return %c0_i32, %c0_i32_0, %c0_i32_1 : i32, i32, i32
  }
  func.func @transform_2(%arg0: i32) -> (i32, i32) {
    %c0_i32 = arith.constant 0 : i32
    %c0_i32_0 = arith.constant 0 : i32
    %c0_i32_1 = arith.constant 0 : i32
    return %c0_i32, %c0_i32_0 : i32, i32
  }
  func.func @transform_3(%arg0: i32) -> (i32, i32) {
    %c0_i32 = arith.constant 0 : i32
    %c0_i32_0 = arith.constant 0 : i32
    return %arg0, %c0_i32 : i32, i32
  }
}

</mosaic_0001>

<llo_original>
// kernel: forward.1
$region0: #{forward.1}
  #allocation0 [shape = 'u32[]', space=smem, size = 0x4, offset = 0x4, fixed_abs, tag = 'smem constant byte address 0x4 - core index']
  #allocation1 [shape = 'u32[144,128]{1,0:T(1,128)}', space=vmem, size = 0x12000, scoped, tag = 'internal scratch']
  %s0 = inlined_call_operand.hbm [shape: f32[8,16], index: 0, kind: input, shape index: {}]
  %s1 = inlined_call_operand.hbm [shape: f32[4,128,128], index: 1, kind: input, shape index: {}]
  %s2 = inlined_call_operand.hbm [shape: f32[8,128], index: 2, kind: input, shape index: {}]
  %s3 = inlined_call_operand.vmem [shape: f32[8,4], index: 3, kind: output, shape index: {}]
  %s4 = sld [smem:[#allocation0]]
  $region34: #{forward.1} parent=0
    _
  %s6 = ssub.s32 1, %s4
  %s7 = scalar_select 0, %s6, %s4
  $region1: #{forward.1} parent=0
    #allocation2 [shape = 'u8[4096]{0}', space=vmem, size = 0x1000, scoped, tag = 'input window, operand 0, single buffered']
    #allocation3 [shape = 's32[1]{0}', space=sflag, size = 0x4, scoped, tag = 'scoped memory for forward.1']
    #allocation4 [shape = 'u8[262144]{0}', space=vmem, size = 0x40000, scoped, tag = 'input window, operand 1, single buffered']
    #allocation5 [shape = 's32[1]{0}', space=sflag, size = 0x4, scoped, tag = 'scoped memory for forward.1']
    #allocation6 [shape = 'u8[4096]{0}', space=vmem, size = 0x1000, scoped, tag = 'input window, operand 2, single buffered']
    %8 = vsyncpa [#allocation3], 0
    %9 = vsyncpa [#allocation5], 0
    // Predicated region
    $region2: #{forward.1} parent=1 // pred_check
      _
    $region3: #{forward.1} parent=1 // pred_check_branch
      %11 = sbr.rel (0) target = $region5
    $region4: #{forward.1} parent=1 // pred_region
      %s13 = ssub.s32 128, 128
      %14 = vsyncadd [#allocation3], %s13
      %s16 = sshll.u32 [#allocation2], 4
      %s17 = int_to_ptr.vmem [resolvable:$true] %s16
      %19 = dma.hbm_to_vmem [thread:$0]  %s0, 128, %s17, [#allocation3]
    $region5: #{forward.1} parent=1 // pred_fallthru
      _
    // Predicated region
    $region6: #{forward.1} parent=1 // pred_check
      _
    $region7: #{forward.1} parent=1 // pred_check_branch
      %21 = sbr.rel (0) target = $region9
    $region8: #{forward.1} parent=1 // pred_region
      %s23 = ssub.s32 8192, 8192
      %24 = vsyncadd [#allocation5], %s23
      %s25 = sshll.u32 [#allocation4], 4
      %s26 = int_to_ptr.vmem [resolvable:$true] %s25
      %31 = dma.hbm_to_vmem [thread:$0]  %s1, 8192, %s26, [#allocation5], 128, 128, 8
    $region9: #{forward.1} parent=1 // pred_fallthru
      _
    // Predicated region
    $region10: #{forward.1} parent=1 // pred_check
      _
    $region11: #{forward.1} parent=1 // pred_check_branch
      %33 = sbr.rel (0) target = $region13
    $region12: #{forward.1} parent=1 // pred_region
      %s35 = ssub.s32 128, 128
      %36 = vsyncadd [#allocation5], %s35
      %s38 = sshll.u32 [#allocation6], 4
      %s39 = int_to_ptr.vmem [resolvable:$true] %s38
      %41 = dma.hbm_to_vmem [thread:$0]  %s2, 128, %s39, [#allocation5]
    $region13: #{forward.1} parent=1 // pred_fallthru
      _
    // Predicated region
    $region14: #{forward.1} parent=1 // pred_check
      _
    $region15: #{forward.1} parent=1 // pred_check_branch
      %43 = sbr.rel (0) target = $region17
    $region16: #{forward.1} parent=1 // pred_region
      %44 = dma.done [#allocation3], 128
    $region17: #{forward.1} parent=1 // pred_fallthru
      _
    // Predicated region
    $region18: #{forward.1} parent=1 // pred_check
      _
    $region19: #{forward.1} parent=1 // pred_check_branch
      %46 = sbr.rel (0) target = $region21
    $region20: #{forward.1} parent=1 // pred_region
      %47 = dma.done [#allocation5], 8192
    $region21: #{forward.1} parent=1 // pred_fallthru
      _
    // Predicated region
    $region22: #{forward.1} parent=1 // pred_check
      _
    $region23: #{forward.1} parent=1 // pred_check_branch
      %49 = sbr.rel (0) target = $region25
    $region24: #{forward.1} parent=1 // pred_region
      %50 = dma.done [#allocation5], 128
    $region25: #{forward.1} parent=1 // pred_fallthru
      _
    %v51 = vld [vmem:[#allocation2] sm:$0xff]
    %v52 = vld [vmem:[#allocation4] sm:$0xff]
    %v53 = vld [vmem:[#allocation4 + $0x8] sm:$0xff]
    %v54 = vld [vmem:[#allocation6] sm:$0x1]
    %v55 = vlaneseq
    %v56 = vshrl.u32 %v55, 7
    %v57 = vsub.s32 0, %v56
    %v58 = vrot.slane %v54, %v57
    %vm59 = vcmask 130048
    %v61 = vsel %vm59, %v51, 0
    %63 = vmatprep.subr.mxu0 0.0
    %64 = vmatpush1.msra.mxu0 %v52
    %65 = vmatprep.subr.mxu0 0.0
    %66 = vmatpush1.msra.mxu0 %v53
    %67 = vmatprep.subr.mxu0 0.0
    %68 = vmatpush1.msra.mxu0 0.0
    %69 = vmatprep.subr.mxu0 0.0
    %70 = vmatpush1.msra.mxu0 0.0
    %71 = vmatprep.subr.mxu0 0.0
    %72 = vmatpush1.msra.mxu0 0.0
    %73 = vmatprep.subr.mxu0 0.0
    %74 = vmatpush1.msra.mxu0 0.0
    %75 = vmatprep.subr.mxu0 0.0
    %76 = vmatpush1.msra.mxu0 0.0
    %77 = vmatprep.subr.mxu0 0.0
    %78 = vmatpush1.msra.mxu0 0.0
    %79 = vmatprep.subr.mxu0 0.0
    %80 = vmatpush1.msra.mxu0 0.0
    %81 = vmatprep.subr.mxu0 0.0
    %82 = vmatpush1.msra.mxu0 0.0
    %83 = vmatprep.subr.mxu0 0.0
    %84 = vmatpush1.msra.mxu0 0.0
    %85 = vmatprep.subr.mxu0 0.0
    %86 = vmatpush1.msra.mxu0 0.0
    %87 = vmatprep.subr.mxu0 0.0
    %88 = vmatpush1.msra.mxu0 0.0
    %89 = vmatprep.subr.mxu0 0.0
    %90 = vmatpush1.msra.mxu0 0.0
    %91 = vmatprep.subr.mxu0 0.0
    %92 = vmatpush1.msra.mxu0 0.0
    %93 = vmatprep.subr.mxu0 0.0
    %94 = vmatpush1.msra.mxu0 0.0
    %95 = vmatprep.subr.mxu0 0.0
    %96 = vmatpush1.msra.mxu0 0.0
    %97 = vmatprep.subr.mxu0 0.0
    %98 = vmatpush1.msra.mxu0 0.0
    %99 = vmatprep.subr.mxu0 0.0
    %100 = vmatpush1.msra.mxu0 0.0
    %101 = vmatprep.subr.mxu0 0.0
    %102 = vmatpush1.msra.mxu0 0.0
    %103 = vmatprep.subr.mxu0 0.0
    %104 = vmatpush1.msra.mxu0 0.0
    %105 = vmatprep.subr.mxu0 0.0
    %106 = vmatpush1.msra.mxu0 0.0
    %107 = vmatprep.subr.mxu0 0.0
    %108 = vmatpush1.msra.mxu0 0.0
    %109 = vmatprep.subr.mxu0 0.0
    %110 = vmatpush1.msra.mxu0 0.0
    %111 = vmatprep.subr.mxu0 0.0
    %112 = vmatpush1.msra.mxu0 0.0
    %113 = vmatprep.subr.mxu0 0.0
    %114 = vmatpush1.msra.mxu0 0.0
    %115 = vmatprep.subr.mxu0 0.0
    %116 = vmatpush1.msra.mxu0 0.0
    %117 = vmatprep.subr.mxu0 0.0
    %118 = vmatpush1.msra.mxu0 0.0
    %119 = vmatprep.subr.mxu0 0.0
    %120 = vmatpush1.msra.mxu0 0.0
    %121 = vmatprep.subr.mxu0 0.0
    %122 = vmatpush1.msra.mxu0 0.0
    %123 = vmatprep.subr.mxu0 0.0
    %124 = vmatpush1.msra.mxu0 0.0
    %125 = vmatprep.subr.mxu0 0.0
    %126 = vmatpush1.msra.mxu0 0.0
    %127 = vmatprep.mubr.f32.mxu0 0.0
    %128 = vmatmul.mubr.f32.gmra.mrb[0].mxu0 %v61
    %v129 = vpop.f32.mrb[0].mxu0
    %v130 = vadd.f32 %v58, %v129
    %v131 = vpop.f32.mrb[0].mxu0
    %132 = vdwg.mxu0
    %v133 = vtanh.pop %v130
    %s134 = scalar_lea.vmem [#allocation4], 128
    %v135 = vld [vmem:[%s134] sm:$0xff]
    %v136 = vld [vmem:[%s134 + $0x8] sm:$0xff]
    %v137 = vld [vmem:[%s134 + $0x10] sm:$0xff]
    %v138 = vld [vmem:[%s134 + $0x18] sm:$0xff]
    %v139 = vld [vmem:[%s134 + $0x20] sm:$0xff]
    %v140 = vld [vmem:[%s134 + $0x28] sm:$0xff]
    %v141 = vld [vmem:[%s134 + $0x30] sm:$0xff]
    %v142 = vld [vmem:[%s134 + $0x38] sm:$0xff]
    %v143 = vld [vmem:[%s134 + $0x40] sm:$0xff]
    %v144 = vld [vmem:[%s134 + $0x48] sm:$0xff]
    %v145 = vld [vmem:[%s134 + $0x50] sm:$0xff]
    %v146 = vld [vmem:[%s134 + $0x58] sm:$0xff]
    %v147 = vld [vmem:[%s134 + $0x60] sm:$0xff]
    %v148 = vld [vmem:[%s134 + $0x68] sm:$0xff]
    %v149 = vld [vmem:[%s134 + $0x70] sm:$0xff]
    %v150 = vld [vmem:[%s134 + $0x78] sm:$0xff]
    %v151 = vld [vmem:[#allocation6 + $0x1] sm:$0x1]
    %v152 = vlaneseq
    %v153 = vshrl.u32 %v152, 7
    %v154 = vsub.s32 0, %v153
    %v155 = vrot.slane %v151, %v154
    %156 = vmatprep.subr.mxu0 0.0
    %157 = vmatpush1.msra.mxu0 %v135
    %158 = vmatprep.subr.mxu0 0.0
    %159 = vmatpush1.msra.mxu0 %v136
    %160 = vmatprep.subr.mxu0 0.0
    %161 = vmatpush1.msra.mxu0 %v137
    %162 = vmatprep.subr.mxu0 0.0
    %163 = vmatpush1.msra.mxu0 %v138
    %164 = vmatprep.subr.mxu0 0.0
    %165 = vmatpush1.msra.mxu0 %v139
    %166 = vmatprep.subr.mxu0 0.0
    %167 = vmatpush1.msra.mxu0 %v140
    %168 = vmatprep.subr.mxu0 0.0
    %169 = vmatpush1.msra.mxu0 %v141
    %170 = vmatprep.subr.mxu0 0.0
    %171 = vmatpush1.msra.mxu0 %v142
    %172 = vmatprep.subr.mxu0 0.0
    %173 = vmatpush1.msra.mxu0 %v143
    %174 = vmatprep.subr.mxu0 0.0
    %175 = vmatpush1.msra.mxu0 %v144
    %176 = vmatprep.subr.mxu0 0.0
    %177 = vmatpush1.msra.mxu0 %v145
    %178 = vmatprep.subr.mxu0 0.0
    %179 = vmatpush1.msra.mxu0 %v146
    %180 = vmatprep.subr.mxu0 0.0
    %181 = vmatpush1.msra.mxu0 %v147
    %182 = vmatprep.subr.mxu0 0.0
    %183 = vmatpush1.msra.mxu0 %v148
    %184 = vmatprep.subr.mxu0 0.0
    %185 = vmatpush1.msra.mxu0 %v149
    %186 = vmatprep.subr.mxu0 0.0
    %187 = vmatpush1.msra.mxu0 %v150
    %188 = vmatprep.subr.mxu0 0.0
    %189 = vmatpush1.msra.mxu0 0.0
    %190 = vmatprep.subr.mxu0 0.0
    %191 = vmatpush1.msra.mxu0 0.0
    %192 = vmatprep.subr.mxu0 0.0
    %193 = vmatpush1.msra.mxu0 0.0
    %194 = vmatprep.subr.mxu0 0.0
    %195 = vmatpush1.msra.mxu0 0.0
    %196 = vmatprep.subr.mxu0 0.0
    %197 = vmatpush1.msra.mxu0 0.0
    %198 = vmatprep.subr.mxu0 0.0
    %199 = vmatpush1.msra.mxu0 0.0
    %200 = vmatprep.subr.mxu0 0.0
    %201 = vmatpush1.msra.mxu0 0.0
    %202 = vmatprep.subr.mxu0 0.0
    %203 = vmatpush1.msra.mxu0 0.0
    %204 = vmatprep.subr.mxu0 0.0
    %205 = vmatpush1.msra.mxu0 0.0
    %206 = vmatprep.subr.mxu0 0.0
    %207 = vmatpush1.msra.mxu0 0.0
    %208 = vmatprep.subr.mxu0 0.0
    %209 = vmatpush1.msra.mxu0 0.0
    %210 = vmatprep.subr.mxu0 0.0
    %211 = vmatpush1.msra.mxu0 0.0
    %212 = vmatprep.subr.mxu0 0.0
    %213 = vmatpush1.msra.mxu0 0.0
    %214 = vmatprep.subr.mxu0 0.0
    %215 = vmatpush1.msra.mxu0 0.0
    %216 = vmatprep.subr.mxu0 0.0
    %217 = vmatpush1.msra.mxu0 0.0
    %218 = vmatprep.subr.mxu0 0.0
    %219 = vmatpush1.msra.mxu0 0.0
    %220 = vmatprep.mubr.f32.mxu0 0.0
    %221 = vmatmul.mubr.f32.gmra.mrb[0].mxu0 %v133
    %v222 = vpop.f32.mrb[0].mxu0
    %v223 = vadd.f32 %v155, %v222
    %v224 = vpop.f32.mrb[0].mxu0
    %225 = vdwg.mxu0
    %v226 = vtanh.pop %v223
    %s227 = scalar_lea.vmem [#allocation4], 256
    %v228 = vld [vmem:[%s227] sm:$0xff]
    %v229 = vld [vmem:[%s227 + $0x8] sm:$0xff]
    %v230 = vld [vmem:[%s227 + $0x10] sm:$0xff]
    %v231 = vld [vmem:[%s227 + $0x18] sm:$0xff]
    %v232 = vld [vmem:[%s227 + $0x20] sm:$0xff]
    %v233 = vld [vmem:[%s227 + $0x28] sm:$0xff]
    %v234 = vld [vmem:[%s227 + $0x30] sm:$0xff]
    %v235 = vld [vmem:[%s227 + $0x38] sm:$0xff]
    %v236 = vld [vmem:[%s227 + $0x40] sm:$0xff]
    %v237 = vld [vmem:[%s227 + $0x48] sm:$0xff]
    %v238 = vld [vmem:[%s227 + $0x50] sm:$0xff]
    %v239 = vld [vmem:[%s227 + $0x58] sm:$0xff]
    %v240 = vld [vmem:[%s227 + $0x60] sm:$0xff]
    %v241 = vld [vmem:[%s227 + $0x68] sm:$0xff]
    %v242 = vld [vmem:[%s227 + $0x70] sm:$0xff]
    %v243 = vld [vmem:[%s227 + $0x78] sm:$0xff]
    %v244 = vld [vmem:[#allocation6 + $0x2] sm:$0x1]
    %v245 = vlaneseq
    %v246 = vshrl.u32 %v245, 7
    %v247 = vsub.s32 0, %v246
    %v248 = vrot.slane %v244, %v247
    %249 = vmatprep.subr.mxu0 0.0
    %250 = vmatpush1.msra.mxu0 %v228
    %251 = vmatprep.subr.mxu0 0.0
    %252 = vmatpush1.msra.mxu0 %v229
    %253 = vmatprep.subr.mxu0 0.0
    %254 = vmatpush1.msra.mxu0 %v230
    %255 = vmatprep.subr.mxu0 0.0
    %256 = vmatpush1.msra.mxu0 %v231
    %257 = vmatprep.subr.mxu0 0.0
    %258 = vmatpush1.msra.mxu0 %v232
    %259 = vmatprep.subr.mxu0 0.0
    %260 = vmatpush1.msra.mxu0 %v233
    %261 = vmatprep.subr.mxu0 0.0
    %262 = vmatpush1.msra.mxu0 %v234
    %263 = vmatprep.subr.mxu0 0.0
    %264 = vmatpush1.msra.mxu0 %v235
    %265 = vmatprep.subr.mxu0 0.0
    %266 = vmatpush1.msra.mxu0 %v236
    %267 = vmatprep.subr.mxu0 0.0
    %268 = vmatpush1.msra.mxu0 %v237
    %269 = vmatprep.subr.mxu0 0.0
    %270 = vmatpush1.msra.mxu0 %v238
    %271 = vmatprep.subr.mxu0 0.0
    %272 = vmatpush1.msra.mxu0 %v239
    %273 = vmatprep.subr.mxu0 0.0
    %274 = vmatpush1.msra.mxu0 %v240
    %275 = vmatprep.subr.mxu0 0.0
    %276 = vmatpush1.msra.mxu0 %v241
    %277 = vmatprep.subr.mxu0 0.0
    %278 = vmatpush1.msra.mxu0 %v242
    %279 = vmatprep.subr.mxu0 0.0
    %280 = vmatpush1.msra.mxu0 %v243
    %281 = vmatprep.subr.mxu0 0.0
    %282 = vmatpush1.msra.mxu0 0.0
    %283 = vmatprep.subr.mxu0 0.0
    %284 = vmatpush1.msra.mxu0 0.0
    %285 = vmatprep.subr.mxu0 0.0
    %286 = vmatpush1.msra.mxu0 0.0
    %287 = vmatprep.subr.mxu0 0.0
    %288 = vmatpush1.msra.mxu0 0.0
    %289 = vmatprep.subr.mxu0 0.0
    %290 = vmatpush1.msra.mxu0 0.0
    %291 = vmatprep.subr.mxu0 0.0
    %292 = vmatpush1.msra.mxu0 0.0
    %293 = vmatprep.subr.mxu0 0.0
    %294 = vmatpush1.msra.mxu0 0.0
    %295 = vmatprep.subr.mxu0 0.0
    %296 = vmatpush1.msra.mxu0 0.0
    %297 = vmatprep.subr.mxu0 0.0
    %298 = vmatpush1.msra.mxu0 0.0
    %299 = vmatprep.subr.mxu0 0.0
    %300 = vmatpush1.msra.mxu0 0.0
    %301 = vmatprep.subr.mxu0 0.0
    %302 = vmatpush1.msra.mxu0 0.0
    %303 = vmatprep.subr.mxu0 0.0
    %304 = vmatpush1.msra.mxu0 0.0
    %305 = vmatprep.subr.mxu0 0.0
    %306 = vmatpush1.msra.mxu0 0.0
    %307 = vmatprep.subr.mxu0 0.0
    %308 = vmatpush1.msra.mxu0 0.0
    %309 = vmatprep.subr.mxu0 0.0
    %310 = vmatpush1.msra.mxu0 0.0
    %311 = vmatprep.subr.mxu0 0.0
    %312 = vmatpush1.msra.mxu0 0.0
    %313 = vmatprep.mubr.f32.mxu0 0.0
    %314 = vmatmul.mubr.f32.gmra.mrb[0].mxu0 %v226
    %v315 = vpop.f32.mrb[0].mxu0
    %v316 = vadd.f32 %v248, %v315
    %v317 = vpop.f32.mrb[0].mxu0
    %318 = vdwg.mxu0
    %v319 = vtanh.pop %v316
    %s320 = scalar_lea.vmem [#allocation4], 384
    %v321 = vld [vmem:[%s320] sm:$0xff]
    %v322 = vld [vmem:[%s320 + $0x8] sm:$0xff]
    %v323 = vld [vmem:[%s320 + $0x10] sm:$0xff]
    %v324 = vld [vmem:[%s320 + $0x18] sm:$0xff]
    %v325 = vld [vmem:[%s320 + $0x20] sm:$0xff]
    %v326 = vld [vmem:[%s320 + $0x28] sm:$0xff]
    %v327 = vld [vmem:[%s320 + $0x30] sm:$0xff]
    %v328 = vld [vmem:[%s320 + $0x38] sm:$0xff]
    %v329 = vld [vmem:[%s320 + $0x40] sm:$0xff]
    %v330 = vld [vmem:[%s320 + $0x48] sm:$0xff]
    %v331 = vld [vmem:[%s320 + $0x50] sm:$0xff]
    %v332 = vld [vmem:[%s320 + $0x58] sm:$0xff]
    %v333 = vld [vmem:[%s320 + $0x60] sm:$0xff]
    %v334 = vld [vmem:[%s320 + $0x68] sm:$0xff]
    %v335 = vld [vmem:[%s320 + $0x70] sm:$0xff]
    %v336 = vld [vmem:[%s320 + $0x78] sm:$0xff]
    %v337 = vld [vmem:[#allocation6 + $0x3] sm:$0x1]
    %v338 = vlaneseq
    %v339 = vshrl.u32 %v338, 7
    %v340 = vsub.s32 0, %v339
    %v341 = vrot.slane %v337, %v340
    %342 = vmatprep.subr.mxu0 0.0
    %343 = vmatpush1.msra.mxu0 %v321
    %344 = vmatprep.subr.mxu0 0.0
    %345 = vmatpush1.msra.mxu0 %v322
    %346 = vmatprep.subr.mxu0 0.0
    %347 = vmatpush1.msra.mxu0 %v323
    %348 = vmatprep.subr.mxu0 0.0
    %349 = vmatpush1.msra.mxu0 %v324
    %350 = vmatprep.subr.mxu0 0.0
    %351 = vmatpush1.msra.mxu0 %v325
    %352 = vmatprep.subr.mxu0 0.0
    %353 = vmatpush1.msra.mxu0 %v326
    %354 = vmatprep.subr.mxu0 0.0
    %355 = vmatpush1.msra.mxu0 %v327
    %356 = vmatprep.subr.mxu0 0.0
    %357 = vmatpush1.msra.mxu0 %v328
    %358 = vmatprep.subr.mxu0 0.0
    %359 = vmatpush1.msra.mxu0 %v329
    %360 = vmatprep.subr.mxu0 0.0
    %361 = vmatpush1.msra.mxu0 %v330
    %362 = vmatprep.subr.mxu0 0.0
    %363 = vmatpush1.msra.mxu0 %v331
    %364 = vmatprep.subr.mxu0 0.0
    %365 = vmatpush1.msra.mxu0 %v332
    %366 = vmatprep.subr.mxu0 0.0
    %367 = vmatpush1.msra.mxu0 %v333
    %368 = vmatprep.subr.mxu0 0.0
    %369 = vmatpush1.msra.mxu0 %v334
    %370 = vmatprep.subr.mxu0 0.0
    %371 = vmatpush1.msra.mxu0 %v335
    %372 = vmatprep.subr.mxu0 0.0
    %373 = vmatpush1.msra.mxu0 %v336
    %374 = vmatprep.subr.mxu0 0.0
    %375 = vmatpush1.msra.mxu0 0.0
    %376 = vmatprep.subr.mxu0 0.0
    %377 = vmatpush1.msra.mxu0 0.0
    %378 = vmatprep.subr.mxu0 0.0
    %379 = vmatpush1.msra.mxu0 0.0
    %380 = vmatprep.subr.mxu0 0.0
    %381 = vmatpush1.msra.mxu0 0.0
    %382 = vmatprep.subr.mxu0 0.0
    %383 = vmatpush1.msra.mxu0 0.0
    %384 = vmatprep.subr.mxu0 0.0
    %385 = vmatpush1.msra.mxu0 0.0
    %386 = vmatprep.subr.mxu0 0.0
    %387 = vmatpush1.msra.mxu0 0.0
    %388 = vmatprep.subr.mxu0 0.0
    %389 = vmatpush1.msra.mxu0 0.0
    %390 = vmatprep.subr.mxu0 0.0
    %391 = vmatpush1.msra.mxu0 0.0
    %392 = vmatprep.subr.mxu0 0.0
    %393 = vmatpush1.msra.mxu0 0.0
    %394 = vmatprep.subr.mxu0 0.0
    %395 = vmatpush1.msra.mxu0 0.0
    %396 = vmatprep.subr.mxu0 0.0
    %397 = vmatpush1.msra.mxu0 0.0
    %398 = vmatprep.subr.mxu0 0.0
    %399 = vmatpush1.msra.mxu0 0.0
    %400 = vmatprep.subr.mxu0 0.0
    %401 = vmatpush1.msra.mxu0 0.0
    %402 = vmatprep.subr.mxu0 0.0
    %403 = vmatpush1.msra.mxu0 0.0
    %404 = vmatprep.subr.mxu0 0.0
    %405 = vmatpush1.msra.mxu0 0.0
    %406 = vmatprep.mubr.f32.mxu0 0.0
    %407 = vmatmul.mubr.f32.gmra.mrb[0].mxu0 %v319
    %v408 = vpop.f32.mrb[0].mxu0
    %v409 = vadd.f32 %v341, %v408
    %v410 = vpop.f32.mrb[0].mxu0
    %411 = vdwg.mxu0
    %vm412 = vcmask 31744
    %v413 = vsel %vm412, %v409, -inf
    %414 = vmax.xlane.f32.xlu0 %v413
    %v415 = vpop.xlane.xlu0 %414
    %v416 = vsub.f32 %v409, %v415
    %v417 = vmul.f32 %v416, 1.442695
    %v418 = vpow.pop %v417
    %v419 = vsel %vm412, %v418, 0.0
    %420 = vadd.xlane.f32.xlu0 %v419
    %v421 = vpop.xlane.xlu0 %420
    %v422 = vrcp.pop %v421
    %v423 = vmul.f32 %v418, %v422
    %424 = vst.msk [vmem:[%s3] sm:$0xff] %vm412, %v423
    // Predicated region
    $region26: #{forward.1} parent=1 // pred_check
      _
    $region27: #{forward.1} parent=1 // pred_check_branch
      %426 = sbr.rel (0) target = $region29
    $region28: #{forward.1} parent=1 // pred_region
      _
    $region29: #{forward.1} parent=1 // pred_fallthru
      _
    // Predicated region
    $region30: #{forward.1} parent=1 // pred_check
      _
    $region31: #{forward.1} parent=1 // pred_check_branch
      %428 = sbr.rel (0) target = $region33
    $region32: #{forward.1} parent=1 // pred_region
      _
    $region33: #{forward.1} parent=1 // pred_fallthru
      _
    %429 = vsyncpa [#allocation3], 1
    %430 = vsyncpa [#allocation5], 1

</llo_original>
